<compile_context>
chip_gen: v7x
topology: tpu7x:2x2x1
jax: 0.10.0
libtpu: 0.0.40
codegen_flags: <defaults>
</compile_context>

<pallas_src>
import functools

import jax
import jax.numpy as jnp
from jax.experimental import pallas as pl
from jax.experimental.pallas import tpu as pltpu

LANE = 128  # fused-head matmul width (lane-dense MXU pass; outputs are narrow)


def actor_critic_kernel(state_ref, w1_ref, b1_ref, wh_ref, bh_ref,
                        logits_ref, value_ref, *, action_size):
    # Shared layer + ReLU: bf16 operands, f32 MXU accumulation, VPU max.
    x = jnp.dot(state_ref[...], w1_ref[...],
                preferred_element_type=jnp.float32) + b1_ref[...]
    x = jnp.maximum(x, 0.0)
    # Fused actor+critic head: one 128-wide MXU pass over the zero-padded
    # fused weight (bf16 operands, f32 accumulation).
    head = jnp.dot(x.astype(wh_ref.dtype), wh_ref[...],
                   preferred_element_type=jnp.float32) + bh_ref[...]
    # Exact-width stores: only A (+1) useful lanes go back to HBM, so the
    # writeback is ~14x smaller than a dense [tb, 128] slab and there is no
    # wrapper-side slice round-trip.  (vst.msk partial stores are accepted;
    # at large B this kernel is HBM-write-bound, not store-slot-bound.)
    logits_ref[...] = head[:, :action_size].astype(logits_ref.dtype)
    value_ref[...] = head[:, action_size:action_size + 1].astype(value_ref.dtype)


def fuse_head_params(w1, b1, wa, ba, wc, bc):
    """Pre-fuse actor/critic head params ONCE (not per forward call).

    Weights are stored bf16 for single-pass MXU and halved DMA; biases stay
    f32 (added after the f32-accumulated matmul).  Zero-padded head lanes
    guarantee the narrow sliced outputs are exact.
    W layout is [in, out] (transposed vs. torch nn.Linear storage).
    """
    H = w1.shape[1]
    A = wa.shape[1]
    assert A + 1 <= LANE, "fused head assumes action_size + 1 <= 128"
    w_head = (jnp.zeros((H, LANE), jnp.float32)
              .at[:, :A].set(wa.astype(jnp.float32))
              .at[:, A:A + 1].set(wc.astype(jnp.float32)))
    b_head = (jnp.zeros((1, LANE), jnp.float32)
              .at[:, :A].set(ba.reshape(1, A).astype(jnp.float32))
              .at[:, A:A + 1].set(bc.reshape(1, 1).astype(jnp.float32)))
    return {
        "w1": w1.astype(jnp.bfloat16),
        "b1": b1.reshape(1, H).astype(jnp.float32),
        "w_head": w_head.astype(jnp.bfloat16),
        "b_head": b_head,
        "action_size": A,
    }


def actor_critic_forward(state, params, *, block_b=512):
    """state: [B, S] f32.  Returns (logits [B, A], value [B, 1]), both f32."""
    B, S = state.shape
    w1, b1 = params["w1"], params["b1"]
    w_head, b_head = params["w_head"], params["b_head"]
    A = params["action_size"]
    H = w1.shape[1]

    # Large batch tile (per-step overhead dominates small tiles); round up to
    # a sublane multiple and pad B up.  Padded rows compute relu(b1)@W_head
    # (finite garbage) and are sliced off below -- never read out[B:].
    # NOTE: block_b=512 keeps VMEM < 1 MiB; if you push block_b past ~4096 on
    # v5e set pltpu.CompilerParams(vmem_limit_bytes=...), and re-derive the
    # ceiling against v7x's 64 MiB VMEM.
    tb = min(block_b, B)
    tb = max(8, ((tb + 7) // 8) * 8)
    num_tiles = pl.cdiv(B, tb)
    Bp = num_tiles * tb

    state = state.astype(jnp.bfloat16)  # halve activation DMA, bf16 MXU pass
    if Bp != B:
        state = jnp.pad(state, ((0, Bp - B), (0, 0)))

    kernel = functools.partial(actor_critic_kernel, action_size=A)

    logits, value = pl.pallas_call(
        kernel,
        out_shape=(jax.ShapeDtypeStruct((Bp, A), jnp.float32),
                   jax.ShapeDtypeStruct((Bp, 1), jnp.float32)),
        grid=(num_tiles,),
        in_specs=[
            pl.BlockSpec((tb, S), lambda i: (i, 0)),     # state: tiled over batch
            pl.BlockSpec((S, H), lambda i: (0, 0)),      # weights stay VMEM-resident
            pl.BlockSpec((1, H), lambda i: (0, 0)),
            pl.BlockSpec((H, LANE), lambda i: (0, 0)),   # fused head weight (bf16)
            pl.BlockSpec((1, LANE), lambda i: (0, 0)),   # fused head bias (f32)
        ],
        out_specs=(pl.BlockSpec((tb, A), lambda i: (i, 0)),   # exact-width logits
                   pl.BlockSpec((tb, 1), lambda i: (i, 0))),  # exact-width value
        compiler_params=pltpu.CompilerParams(
            # TODO(synk): on v7x, use pltpu.CORE_PARALLEL for true 2-TC batch
            # sharding of the mem-bound large-B case.
            dimension_semantics=("parallel",)),
    )(state, w1, b1, w_head, b_head)

    if Bp != B:
        logits, value = logits[:B], value[:B]
    return logits, value


def reference_forward(state, w1, b1, wa, ba, wc, bc):
    # Numerics-matched reference: bf16 operands, f32 accumulation.
    sb = state.astype(jnp.bfloat16)
    x = jnp.dot(sb, w1.astype(jnp.bfloat16),
                preferred_element_type=jnp.float32) + b1.reshape(1, -1)
    x = jnp.maximum(x, 0.0)
    xb = x.astype(jnp.bfloat16)
    logits = jnp.dot(xb, wa.astype(jnp.bfloat16),
                     preferred_element_type=jnp.float32) + ba.reshape(1, -1)
    value = jnp.dot(xb, wc.astype(jnp.bfloat16),
                    preferred_element_type=jnp.float32) + bc.reshape(1, -1)
    return logits, value


if __name__ == "__main__":
    key = jax.random.PRNGKey(0)
    B, state_size, hidden, action_size = 8, 16, 128, 8

    ks = jax.random.split(key, 7)
    state = jax.random.normal(ks[0], (B, state_size), dtype=jnp.float32)

    # Deterministic parameter init (nn.Linear-equivalent, W stored [in, out]).
    w1 = jax.random.normal(ks[1], (state_size, hidden), dtype=jnp.float32) * 0.1
    b1 = jax.random.normal(ks[2], (hidden,), dtype=jnp.float32) * 0.01
    wa = jax.random.normal(ks[3], (hidden, action_size), dtype=jnp.float32) * 0.1
    ba = jax.random.normal(ks[4], (action_size,), dtype=jnp.float32) * 0.01
    wc = jax.random.normal(ks[5], (hidden, 1), dtype=jnp.float32) * 0.1
    bc = jax.random.normal(ks[6], (1,), dtype=jnp.float32) * 0.01

    # Fuse head params ONCE (RL inner loop should reuse `params`).
    params = fuse_head_params(w1, b1, wa, ba, wc, bc)

    logits, value = actor_critic_forward(state, params)
    jax.block_until_ready((logits, value))

    ref_logits, ref_value = reference_forward(state, w1, b1, wa, ba, wc, bc)
    assert logits.shape == (B, action_size)
    assert value.shape == (B, 1)
    assert jnp.allclose(logits, ref_logits, atol=1e-3, rtol=1e-3)
    assert jnp.allclose(value, ref_value, atol=1e-3, rtol=1e-3)

    # Also exercise the multi-tile grid + padding path (B > tile).
    big_B = 1200
    big_state = jax.random.normal(ks[0], (big_B, state_size), dtype=jnp.float32)
    big_logits, big_value = actor_critic_forward(big_state, params)
    jax.block_until_ready((big_logits, big_value))
    rL, rV = reference_forward(big_state, w1, b1, wa, ba, wc, bc)
    assert big_logits.shape == (big_B, action_size)
    assert big_value.shape == (big_B, 1)
    assert jnp.allclose(big_logits, rL, atol=1e-3, rtol=1e-3)
    assert jnp.allclose(big_value, rV, atol=1e-3, rtol=1e-3)

    print("KERNEL_OK")
</pallas_src>

<mosaic_0001>
module attributes {stable_mosaic.version = 11 : i64} {
  func.func @actor_critic_kernel(%arg0: i32, %arg1: memref<8x16xbf16, #tpu.memory_space<vmem>>, %arg2: memref<16x128xbf16, #tpu.memory_space<vmem>>, %arg3: memref<1x128xf32, #tpu.memory_space<vmem>>, %arg4: memref<128x128xbf16, #tpu.memory_space<vmem>>, %arg5: memref<1x128xf32, #tpu.memory_space<vmem>>, %arg6: memref<8x8xf32, #tpu.memory_space<vmem>>, %arg7: memref<8x1xf32, #tpu.memory_space<vmem>>) attributes {dimension_semantics = [#tpu.dimension_semantics<parallel>], iteration_bounds = array<i64: 1>, scalar_prefetch = 0 : i64, scratch_operands = 0 : i64, tpu.core_type = #tpu.core_type<tc>, window_params = [{transform_indices = @transform_0, window_bounds = array<i64: 8, 16>}, {pipeline_mode = #tpu.pipeline_mode<synchronous>, transform_indices = @transform_1, window_bounds = array<i64: 16, 128>}, {pipeline_mode = #tpu.pipeline_mode<synchronous>, transform_indices = @transform_2, window_bounds = array<i64: 1, 128>}, {pipeline_mode = #tpu.pipeline_mode<synchronous>, transform_indices = @transform_3, window_bounds = array<i64: 128, 128>}, {pipeline_mode = #tpu.pipeline_mode<synchronous>, transform_indices = @transform_4, window_bounds = array<i64: 1, 128>}, {transform_indices = @transform_5, window_bounds = array<i64: 8, 8>}, {transform_indices = @transform_6, window_bounds = array<i64: 8, 1>}]} {
    %c0 = arith.constant 0 : index
    %c0_0 = arith.constant 0 : index
    %0 = vector.load %arg1[%c0, %c0_0] : memref<8x16xbf16, #tpu.memory_space<vmem>>, vector<8x16xbf16>
    %c0_1 = arith.constant 0 : index
    %c0_2 = arith.constant 0 : index
    %1 = vector.load %arg2[%c0_1, %c0_2] : memref<16x128xbf16, #tpu.memory_space<vmem>>, vector<16x128xbf16>
    %cst = arith.constant dense<0.000000e+00> : vector<8x128xf32>
    %2 = tpu.matmul %0, %1, %cst {dimension_numbers = #tpu.dot_dimension_numbers<[1], [0], [0], [1], [0, 0, 1, 1], [], []>} : vector<8x16xbf16>, vector<16x128xbf16>, vector<8x128xf32> -> vector<8x128xf32>
    %c0_3 = arith.constant 0 : index
    %c0_4 = arith.constant 0 : index
    %3 = vector.load %arg3[%c0_3, %c0_4] : memref<1x128xf32, #tpu.memory_space<vmem>>, vector<1x128xf32>
    %4 = vector.broadcast %3 : vector<1x128xf32> to vector<8x128xf32>
    %5 = arith.addf %2, %4 : vector<8x128xf32>
    %cst_5 = arith.constant 0.000000e+00 : f32
    %6 = vector.broadcast %cst_5 : f32 to vector<8x128xf32>
    %7 = arith.maximumf %5, %6 : vector<8x128xf32>
    %8 = arith.truncf %7 : vector<8x128xf32> to vector<8x128xbf16>
    %c0_6 = arith.constant 0 : index
    %c0_7 = arith.constant 0 : index
    %9 = vector.load %arg4[%c0_6, %c0_7] : memref<128x128xbf16, #tpu.memory_space<vmem>>, vector<128x128xbf16>
    %cst_8 = arith.constant dense<0.000000e+00> : vector<8x128xf32>
    %10 = tpu.matmul %8, %9, %cst_8 {dimension_numbers = #tpu.dot_dimension_numbers<[1], [0], [0], [1], [0, 0, 1, 1], [], []>} : vector<8x128xbf16>, vector<128x128xbf16>, vector<8x128xf32> -> vector<8x128xf32>
    %c0_9 = arith.constant 0 : index
    %c0_10 = arith.constant 0 : index
    %11 = vector.load %arg5[%c0_9, %c0_10] : memref<1x128xf32, #tpu.memory_space<vmem>>, vector<1x128xf32>
    %12 = vector.broadcast %11 : vector<1x128xf32> to vector<8x128xf32>
    %13 = arith.addf %10, %12 : vector<8x128xf32>
    %14 = vector.extract_strided_slice %13 {offsets = [0, 0], sizes = [8, 8], strides = [1, 1]} : vector<8x128xf32> to vector<8x8xf32>
    %c0_11 = arith.constant 0 : index
    %c0_12 = arith.constant 0 : index
    %15 = vector.load %arg6[%c0_11, %c0_12] : memref<8x8xf32, #tpu.memory_space<vmem>>, vector<8x8xf32>
    tpu.vector_store %arg6[%c0_11, %c0_12], %14 {strides = array<i32>} : memref<8x8xf32, #tpu.memory_space<vmem>>, vector<8x8xf32>,
    %16 = vector.extract_strided_slice %13 {offsets = [0, 8], sizes = [8, 1], strides = [1, 1]} : vector<8x128xf32> to vector<8x1xf32>
    %c0_13 = arith.constant 0 : index
    %c0_14 = arith.constant 0 : index
    %17 = vector.load %arg7[%c0_13, %c0_14] : memref<8x1xf32, #tpu.memory_space<vmem>>, vector<8x1xf32>
    tpu.vector_store %arg7[%c0_13, %c0_14], %16 {strides = array<i32>} : memref<8x1xf32, #tpu.memory_space<vmem>>, vector<8x1xf32>,
    return
  }
  func.func @transform_0(%arg0: i32) -> (i32, i32) {
    %c0_i32 = arith.constant 0 : i32
    %c0_i32_0 = arith.constant 0 : i32
    return %arg0, %c0_i32 : i32, i32
  }
  func.func @transform_1(%arg0: i32) -> (i32, i32) {
    %c0_i32 = arith.constant 0 : i32
    %c0_i32_0 = arith.constant 0 : i32
    %c0_i32_1 = arith.constant 0 : i32
    return %c0_i32, %c0_i32_0 : i32, i32
  }
  func.func @transform_2(%arg0: i32) -> (i32, i32) {
    %c0_i32 = arith.constant 0 : i32
    %c0_i32_0 = arith.constant 0 : i32
    %c0_i32_1 = arith.constant 0 : i32
    return %c0_i32, %c0_i32_0 : i32, i32
  }
  func.func @transform_3(%arg0: i32) -> (i32, i32) {
    %c0_i32 = arith.constant 0 : i32
    %c0_i32_0 = arith.constant 0 : i32
    %c0_i32_1 = arith.constant 0 : i32
    return %c0_i32, %c0_i32_0 : i32, i32
  }
  func.func @transform_4(%arg0: i32) -> (i32, i32) {
    %c0_i32 = arith.constant 0 : i32
    %c0_i32_0 = arith.constant 0 : i32
    %c0_i32_1 = arith.constant 0 : i32
    return %c0_i32, %c0_i32_0 : i32, i32
  }
  func.func @transform_5(%arg0: i32) -> (i32, i32) {
    %c0_i32 = arith.constant 0 : i32
    %c0_i32_0 = arith.constant 0 : i32
    return %arg0, %c0_i32 : i32, i32
  }
  func.func @transform_6(%arg0: i32) -> (i32, i32) {
    %c0_i32 = arith.constant 0 : i32
    %c0_i32_0 = arith.constant 0 : i32
    return %arg0, %c0_i32 : i32, i32
  }
}

</mosaic_0001>

<llo_original>
// kernel: tpu_custom_call.1
$region0: #{tpu_custom_call.1}
  #allocation0 [shape = 'u32[]', space=smem, size = 0x4, offset = 0x4, fixed_abs, tag = 'smem constant byte address 0x4 - core index']
  #allocation1 [shape = 'u32[144,128]{1,0:T(1,128)}', space=vmem, size = 0x12000, scoped, tag = 'internal scratch']
  %s0 = inlined_call_operand.hbm [shape: bf16[8,16], index: 0, kind: input, shape index: {}]
  %s1 = inlined_call_operand.hbm [shape: bf16[16,128], index: 1, kind: input, shape index: {}]
  %s2 = inlined_call_operand.vmem [shape: f32[1,128], index: 2, kind: input, shape index: {}]
  %s3 = inlined_call_operand.hbm [shape: bf16[128,128], index: 3, kind: input, shape index: {}]
  %s4 = inlined_call_operand.vmem [shape: f32[1,128], index: 4, kind: input, shape index: {}]
  %s5 = inlined_call_operand.hbm [shape: f32[8,8], index: 5, kind: output, shape index: {0}]
  %s6 = inlined_call_operand.vmem [shape: f32[8,1], index: 6, kind: output, shape index: {1}]
  %7 = xla_tuple %s5, %s6
  %s8 = sld [smem:[#allocation0]]
  $region50: #{tpu_custom_call.1} parent=0
    _
  %s10 = ssub.s32 1, %s8
  %s11 = scalar_select 0, %s10, %s8
  $region1: #{tpu_custom_call.1} parent=0
    #allocation2 [shape = 'u8[2048]{0}', space=vmem, size = 0x800, scoped, tag = 'input window, operand 0, single buffered']
    #allocation3 [shape = 's32[1]{0}', space=sflag, size = 0x4, scoped, tag = 'scoped memory for tpu_custom_call.1']
    #allocation4 [shape = 's32[1]{0}', space=sflag, size = 0x4, scoped, tag = 'scoped memory for tpu_custom_call.1']
    #allocation5 [shape = 'u8[4096]{0}', space=vmem, size = 0x1000, scoped, tag = 'input window, operand 1, single buffered']
    #allocation6 [shape = 's32[1]{0}', space=sflag, size = 0x4, scoped, tag = 'scoped memory for tpu_custom_call.1']
    #allocation7 [shape = 'u8[32768]{0}', space=vmem, size = 0x8000, scoped, tag = 'input window, operand 3, single buffered']
    #allocation8 [shape = 'u8[4096]{0}', space=vmem, size = 0x1000, scoped, tag = 'output window, operand 0, single buffered']
    %12 = vsyncpa [#allocation3], 0
    %13 = vsyncpa [#allocation6], 0
    %14 = vsyncpa [#allocation4], 0
    // Predicated region
    $region2: #{tpu_custom_call.1} parent=1 // pred_check
      _
    $region3: #{tpu_custom_call.1} parent=1 // pred_check_branch
      %16 = sbr.rel (0) target = $region5
    $region4: #{tpu_custom_call.1} parent=1 // pred_region
      %s18 = ssub.s32 64, 64
      %19 = vsyncadd [#allocation3], %s18
      %s21 = sshll.u32 [#allocation2], 4
      %s22 = int_to_ptr.vmem [resolvable:$true] %s21
      %24 = dma.hbm_to_vmem [thread:$0]  %s0, 64, %s22, [#allocation3]
    $region5: #{tpu_custom_call.1} parent=1 // pred_fallthru
      _
    // Predicated region
    $region6: #{tpu_custom_call.1} parent=1 // pred_check
      _
    $region7: #{tpu_custom_call.1} parent=1 // pred_check_branch
      %26 = sbr.rel (0) target = $region9
    $region8: #{tpu_custom_call.1} parent=1 // pred_region
      %s28 = ssub.s32 128, 128
      %29 = vsyncadd [#allocation6], %s28
      %s30 = sshll.u32 [#allocation5], 4
      %s31 = int_to_ptr.vmem [resolvable:$true] %s30
      %36 = dma.hbm_to_vmem [thread:$0]  %s1, 128, %s31, [#allocation6], 64, 64, 4
    $region9: #{tpu_custom_call.1} parent=1 // pred_fallthru
      _
    // Predicated region
    $region10: #{tpu_custom_call.1} parent=1 // pred_check
      _
    $region11: #{tpu_custom_call.1} parent=1 // pred_check_branch
      %38 = sbr.rel (0) target = $region13
    $region12: #{tpu_custom_call.1} parent=1 // pred_region
      _
    $region13: #{tpu_custom_call.1} parent=1 // pred_fallthru
      _
    // Predicated region
    $region14: #{tpu_custom_call.1} parent=1 // pred_check
      _
    $region15: #{tpu_custom_call.1} parent=1 // pred_check_branch
      %40 = sbr.rel (0) target = $region17
    $region16: #{tpu_custom_call.1} parent=1 // pred_region
      %s42 = ssub.s32 1024, 1024
      %43 = vsyncadd [#allocation6], %s42
      %s44 = sshll.u32 [#allocation7], 4
      %s45 = int_to_ptr.vmem [resolvable:$true] %s44
      %50 = dma.hbm_to_vmem [thread:$0]  %s3, 1024, %s45, [#allocation6], 64, 64, 4
    $region17: #{tpu_custom_call.1} parent=1 // pred_fallthru
      _
    // Predicated region
    $region18: #{tpu_custom_call.1} parent=1 // pred_check
      _
    $region19: #{tpu_custom_call.1} parent=1 // pred_check_branch
      %52 = sbr.rel (0) target = $region21
    $region20: #{tpu_custom_call.1} parent=1 // pred_region
      _
    $region21: #{tpu_custom_call.1} parent=1 // pred_fallthru
      _
    // Predicated region
    $region22: #{tpu_custom_call.1} parent=1 // pred_check
      _
    $region23: #{tpu_custom_call.1} parent=1 // pred_check_branch
      %54 = sbr.rel (0) target = $region25
    $region24: #{tpu_custom_call.1} parent=1 // pred_region
      %55 = dma.done [#allocation3], 64
    $region25: #{tpu_custom_call.1} parent=1 // pred_fallthru
      _
    // Predicated region
    $region26: #{tpu_custom_call.1} parent=1 // pred_check
      _
    $region27: #{tpu_custom_call.1} parent=1 // pred_check_branch
      %57 = sbr.rel (0) target = $region29
    $region28: #{tpu_custom_call.1} parent=1 // pred_region
      %58 = dma.done [#allocation6], 128
    $region29: #{tpu_custom_call.1} parent=1 // pred_fallthru
      _
    // Predicated region
    $region30: #{tpu_custom_call.1} parent=1 // pred_check
      _
    $region31: #{tpu_custom_call.1} parent=1 // pred_check_branch
      %60 = sbr.rel (0) target = $region33
    $region32: #{tpu_custom_call.1} parent=1 // pred_region
      %61 = dma.done [#allocation6], 1024
    $region33: #{tpu_custom_call.1} parent=1 // pred_fallthru
      _
    %v63 = vld [vmem:[#allocation2] sm:$0xf]
    %v64 = vld [vmem:[#allocation5] sm:$0xf]
    %v65 = vld [vmem:[#allocation5 + $0x4] sm:$0xf]
    %v66 = vld [vmem:[%s2] sm:$0x1]
    %v68 = vlaneseq
    %v69 = vshrl.u32 %v68, 7
    %v70 = vsub.s32 0, %v69
    %v71 = vrot.slane %v66, %v70
    %v75 = vunpack.c.l.b16 %v64
    %v76 = vunpack.c.l.b16 %v65
    %v77 = vpack.c.b16 %v76, %v75
    %vm79 = vcmask 130048
    %v81 = vsel %vm79, %v63, 0
    %83 = vmatprep.subr.bf16.mxu0 0
    %84 = vmatpush1.bf16.msra.mxu0 %v77
    %85 = vmatprep.subr.bf16.mxu0 0
    %86 = vmatpush1.bf16.msra.mxu0 0
    %87 = vmatprep.subr.bf16.mxu0 0
    %88 = vmatpush1.bf16.msra.mxu0 0
    %89 = vmatprep.subr.bf16.mxu0 0
    %90 = vmatpush1.bf16.msra.mxu0 0
    %91 = vmatprep.subr.bf16.mxu0 0
    %92 = vmatpush1.bf16.msra.mxu0 0
    %93 = vmatprep.subr.bf16.mxu0 0
    %94 = vmatpush1.bf16.msra.mxu0 0
    %95 = vmatprep.subr.bf16.mxu0 0
    %96 = vmatpush1.bf16.msra.mxu0 0
    %97 = vmatprep.subr.bf16.mxu0 0
    %98 = vmatpush1.bf16.msra.mxu0 0
    %99 = vmatprep.subr.bf16.mxu0 0
    %100 = vmatpush1.bf16.msra.mxu0 0
    %101 = vmatprep.subr.bf16.mxu0 0
    %102 = vmatpush1.bf16.msra.mxu0 0
    %103 = vmatprep.subr.bf16.mxu0 0
    %104 = vmatpush1.bf16.msra.mxu0 0
    %105 = vmatprep.subr.bf16.mxu0 0
    %106 = vmatpush1.bf16.msra.mxu0 0
    %107 = vmatprep.subr.bf16.mxu0 0
    %108 = vmatpush1.bf16.msra.mxu0 0
    %109 = vmatprep.subr.bf16.mxu0 0
    %110 = vmatpush1.bf16.msra.mxu0 0
    %111 = vmatprep.subr.bf16.mxu0 0
    %112 = vmatpush1.bf16.msra.mxu0 0
    %113 = vmatprep.subr.bf16.mxu0 0
    %114 = vmatpush1.bf16.msra.mxu0 0
    %115 = vmatprep.mubr.bf16.mxu0 0
    %116 = vmatmul.mubr.bf16.gmra.mrb[0].mxu0 %v81
    %v117 = vpop.f32.mrb[0].mxu0
    %v118 = vadd.f32 %v71, %v117
    %v119 = vpop.f32.mrb[0].mxu0
    %v120 = vpop.f32.mrb[0].mxu0
    %v121 = vpop.f32.mrb[0].mxu0
    %122 = vdwg.mxu0
    %v123 = vmax.f32 %v118, 0.0
    %v124 = vpack.c.bf16 %v123, %v123
    %v125 = vld [vmem:[#allocation7] sm:$0xf]
    %v126 = vld [vmem:[#allocation7 + $0x4] sm:$0xf]
    %v127 = vld [vmem:[#allocation7 + $0x8] sm:$0xf]
    %v128 = vld [vmem:[#allocation7 + $0xc] sm:$0xf]
    %v129 = vld [vmem:[#allocation7 + $0x10] sm:$0xf]
    %v130 = vld [vmem:[#allocation7 + $0x14] sm:$0xf]
    %v131 = vld [vmem:[#allocation7 + $0x18] sm:$0xf]
    %v132 = vld [vmem:[#allocation7 + $0x1c] sm:$0xf]
    %v133 = vld [vmem:[#allocation7 + $0x20] sm:$0xf]
    %v134 = vld [vmem:[#allocation7 + $0x24] sm:$0xf]
    %v135 = vld [vmem:[#allocation7 + $0x28] sm:$0xf]
    %v136 = vld [vmem:[#allocation7 + $0x2c] sm:$0xf]
    %v137 = vld [vmem:[#allocation7 + $0x30] sm:$0xf]
    %v138 = vld [vmem:[#allocation7 + $0x34] sm:$0xf]
    %v139 = vld [vmem:[#allocation7 + $0x38] sm:$0xf]
    %v140 = vld [vmem:[#allocation7 + $0x3c] sm:$0xf]
    %v141 = vld [vmem:[%s4] sm:$0x1]
    %v143 = vlaneseq
    %v144 = vshrl.u32 %v143, 7
    %v145 = vsub.s32 0, %v144
    %v146 = vrot.slane %v141, %v145
    %v164 = vunpack.c.l.b16 %v125
    %v165 = vunpack.c.l.b16 %v126
    %v166 = vunpack.c.l.b16 %v127
    %v167 = vunpack.c.l.b16 %v128
    %v168 = vunpack.c.l.b16 %v129
    %v169 = vunpack.c.l.b16 %v130
    %v170 = vunpack.c.l.b16 %v131
    %v171 = vunpack.c.l.b16 %v132
    %v172 = vunpack.c.l.b16 %v133
    %v173 = vunpack.c.l.b16 %v134
    %v174 = vunpack.c.l.b16 %v135
    %v175 = vunpack.c.l.b16 %v136
    %v176 = vunpack.c.l.b16 %v137
    %v177 = vunpack.c.l.b16 %v138
    %v178 = vunpack.c.l.b16 %v139
    %v179 = vunpack.c.l.b16 %v140
    %v180 = vpack.c.b16 %v165, %v164
    %v181 = vpack.c.b16 %v167, %v166
    %v182 = vpack.c.b16 %v169, %v168
    %v183 = vpack.c.b16 %v171, %v170
    %v184 = vpack.c.b16 %v173, %v172
    %v185 = vpack.c.b16 %v175, %v174
    %v186 = vpack.c.b16 %v177, %v176
    %v187 = vpack.c.b16 %v179, %v178
    %196 = vmatprep.subr.bf16.mxu0 0
    %197 = vmatpush1.bf16.msra.mxu0 %v180
    %198 = vmatprep.subr.bf16.mxu0 0
    %199 = vmatpush1.bf16.msra.mxu0 %v181
    %200 = vmatprep.subr.bf16.mxu0 0
    %201 = vmatpush1.bf16.msra.mxu0 %v182
    %202 = vmatprep.subr.bf16.mxu0 0
    %203 = vmatpush1.bf16.msra.mxu0 %v183
    %204 = vmatprep.subr.bf16.mxu0 0
    %205 = vmatpush1.bf16.msra.mxu0 %v184
    %206 = vmatprep.subr.bf16.mxu0 0
    %207 = vmatpush1.bf16.msra.mxu0 %v185
    %208 = vmatprep.subr.bf16.mxu0 0
    %209 = vmatpush1.bf16.msra.mxu0 %v186
    %210 = vmatprep.subr.bf16.mxu0 0
    %211 = vmatpush1.bf16.msra.mxu0 %v187
    %212 = vmatprep.subr.bf16.mxu0 0
    %213 = vmatpush1.bf16.msra.mxu0 0
    %214 = vmatprep.subr.bf16.mxu0 0
    %215 = vmatpush1.bf16.msra.mxu0 0
    %216 = vmatprep.subr.bf16.mxu0 0
    %217 = vmatpush1.bf16.msra.mxu0 0
    %218 = vmatprep.subr.bf16.mxu0 0
    %219 = vmatpush1.bf16.msra.mxu0 0
    %220 = vmatprep.subr.bf16.mxu0 0
    %221 = vmatpush1.bf16.msra.mxu0 0
    %222 = vmatprep.subr.bf16.mxu0 0
    %223 = vmatpush1.bf16.msra.mxu0 0
    %224 = vmatprep.subr.bf16.mxu0 0
    %225 = vmatpush1.bf16.msra.mxu0 0
    %226 = vmatprep.subr.bf16.mxu0 0
    %227 = vmatpush1.bf16.msra.mxu0 0
    %228 = vmatprep.mubr.bf16.mxu0 0
    %229 = vmatmul.mubr.bf16.gmra.mrb[0].mxu0 %v124
    %v230 = vpop.f32.mrb[0].mxu0
    %v231 = vadd.f32 %v146, %v230
    %v232 = vpop.f32.mrb[0].mxu0
    %v233 = vpop.f32.mrb[0].mxu0
    %v234 = vpop.f32.mrb[0].mxu0
    %235 = vdwg.mxu0
    %vm236 = vcmask 64512
    %237 = vst.msk [vmem:[#allocation8] sm:$0xff] %vm236, %v231
    %239 = vrot.lane.b32.xlu0 %v231, 120
    %v240 = vpop.permute.xlu0 %239
    %vm242 = vcmask 7168
    %243 = vst.msk [vmem:[%s6] sm:$0xff] %vm242, %v240
    // Predicated region
    $region34: #{tpu_custom_call.1} parent=1 // pred_check
      _
    $region35: #{tpu_custom_call.1} parent=1 // pred_check_branch
      %245 = sbr.rel (0) target = $region37
    $region36: #{tpu_custom_call.1} parent=1 // pred_region
      %s247 = ssub.s32 128, 128
      %248 = vsyncadd [#allocation4], %s247
      %s250 = sshll.u32 [#allocation8], 4
      %s251 = int_to_ptr.vmem [resolvable:$true] %s250
      %253 = dma.vmem_to_hbm [thread:$0]  %s251, 128, %s5, [#allocation4]
    $region37: #{tpu_custom_call.1} parent=1 // pred_fallthru
      _
    // Predicated region
    $region38: #{tpu_custom_call.1} parent=1 // pred_check
      _
    $region39: #{tpu_custom_call.1} parent=1 // pred_check_branch
      %255 = sbr.rel (0) target = $region41
    $region40: #{tpu_custom_call.1} parent=1 // pred_region
      _
    $region41: #{tpu_custom_call.1} parent=1 // pred_fallthru
      _
    // Predicated region
    $region42: #{tpu_custom_call.1} parent=1 // pred_check
      _
    $region43: #{tpu_custom_call.1} parent=1 // pred_check_branch
      %257 = sbr.rel (0) target = $region45
    $region44: #{tpu_custom_call.1} parent=1 // pred_region
      %258 = dma.done [#allocation4], 128
    $region45: #{tpu_custom_call.1} parent=1 // pred_fallthru
      _
    // Predicated region
    $region46: #{tpu_custom_call.1} parent=1 // pred_check
      _
    $region47: #{tpu_custom_call.1} parent=1 // pred_check_branch
      %260 = sbr.rel (0) target = $region49
    $region48: #{tpu_custom_call.1} parent=1 // pred_region
      _
    $region49: #{tpu_custom_call.1} parent=1 // pred_fallthru
      _
    %261 = vsyncpa [#allocation3], 1
    %262 = vsyncpa [#allocation6], 1
    %263 = vsyncpa [#allocation4], 1

</llo_original>
